<compile_context>
chip_gen: v7x
topology: tpu7x:2x2x1
jax: 0.10.0
libtpu: 0.0.40
codegen_flags: <defaults>
</compile_context>

<pallas_src>
from functools import lru_cache

import jax
import jax.numpy as jnp
import numpy as np
from jax.experimental import pallas as pl
from jax.experimental.pallas import tpu as pltpu


def _round_up(v, m):
    return ((v + m - 1) // m) * m


# ------------------------------ kernels ------------------------------------ #

def _trend_only_kernel(wt_ref, x_ref, xs_ref, xt_ref):
    """lpf == 0 path: x_t = Wt @ x  (MXU),  x_s = x - x_t  (VPU subtract)."""
    x = x_ref[...]
    xt = jnp.dot(wt_ref[...], x, preferred_element_type=jnp.float32)
    xt_ref[...] = xt.astype(xt_ref.dtype)
    xs_ref[...] = (x.astype(jnp.float32) - xt).astype(xs_ref.dtype)


def _fused_seasonal_trend_kernel(wcat_ref, x_ref, xs_ref, xt_ref):
    """lpf > 0 path: one matmul against [Ws; Wt] stacked along rows."""
    half = xs_ref.shape[0]
    y = jnp.dot(wcat_ref[...], x_ref[...], preferred_element_type=jnp.float32)
    xs_ref[...] = y[:half].astype(xs_ref.dtype)
    xt_ref[...] = y[half:].astype(xt_ref.dtype)


def _trend_zero_seasonal_kernel(wt_ref, x_ref, xs_ref, xt_ref):
    """lpf > 0 but lpf <= st_sep: seasonal band is empty -> x_s == 0."""
    xt_ref[...] = jnp.dot(wt_ref[...], x_ref[...],
                          preferred_element_type=jnp.float32).astype(xt_ref.dtype)
    xs_ref[...] = jnp.zeros(xs_ref.shape, xs_ref.dtype)


# -------------------------- operator construction -------------------------- #

@lru_cache(maxsize=None)
def _build_operators(L, st_sep, padding_rate, lpf):
    """Composed (L, L) trend / seasonal operators.

    pad->rfft->mask->irfft->truncate is a symmetric Toeplitz operator:
        W[i, j] = g[|i - j|],   g = irfft(mask, n=N)
    (irfft's Hermitian weights 1,2,...,2,1 and the 1/N factor are exactly the
    weights of the composed operator), so construction is O(N log N) + O(L^2).
    """
    N = L * (padding_rate + 1)          # zero-padded length
    F = N // 2 + 1                      # rfft bins

    ks = np.arange(F)
    sep_idx = int(st_sep * (padding_rate + 1))
    m_t = (ks < sep_idx).astype(np.float64)               # low freq  -> x_t
    m_s = 1.0 - m_t                                        # high freq -> x_s
    if lpf > 0:
        m_s = m_s * (ks < int(lpf * (padding_rate + 1))).astype(np.float64)

    g_t = np.fft.irfft(m_t, n=N)                           # (N,)
    g_s = np.fft.irfft(m_s, n=N)
    idx = np.abs(np.arange(L)[:, None] - np.arange(L)[None, :])   # (L, L)
    Wt = g_t[idx]
    Ws = g_s[idx]
    return Ws.astype(np.float32), Wt.astype(np.float32)


# -------------------------------- wrapper ----------------------------------- #

def fft_decomp_forward(x, st_sep, padding_rate=9, lpf=0, *,
                       lane_tile=512, compute_dtype=jnp.bfloat16,
                       out_dtype=jnp.float32, io_buffers=2):
    """Pallas equivalent of fft_decomp.forward.  x: (B, L, C).

    compute_dtype=jnp.bfloat16 (default) is the MXU-native path (f32
    accumulation kept); pass jnp.float32 for bit-tighter results.
    out_dtype=jnp.bfloat16 further cuts output HBM writeback if downstream
    tolerates it.  io_buffers can be swept to 3 for small, mem-bound L.
    """
    x = jnp.asarray(x)
    B, L, C = x.shape
    M = B * C

    Ws_np, Wt_np = _build_operators(int(L), st_sep, int(padding_rate), lpf)

    # Aligned sizes: Lp multiple of 128 (clean MXU/vreg tiles for f32 and
    # bf16), Mp a multiple of the lane tile (no 128-wide fallback tiles).
    Lp = _round_up(L, 128)
    lane_tile = max(128, _round_up(int(lane_tile), 128))
    Mt = min(lane_tile, _round_up(M, 128))
    Mp = _round_up(M, Mt)
    num_tiles = Mp // Mt
    # v7x megacore: prefer >= 2 parallel lane tiles when the split is free.
    if num_tiles == 1 and Mt % 256 == 0:
        Mt //= 2
        Mp = _round_up(M, Mt)
        num_tiles = Mp // Mt

    # Cast first (halves transpose bytes for bf16), then build the lane-dense
    # (L, B*C) slab and zero-pad to (Lp, Mp).
    x2 = jnp.transpose(x.astype(compute_dtype), (1, 0, 2)).reshape(L, M)
    x2 = jnp.pad(x2, ((0, Lp - L), (0, Mp - M)))

    def _pad_w(w_np):
        wp = np.zeros((Lp, Lp), np.float32)
        wp[:L, :L] = w_np
        return wp

    seasonal_dead = (lpf > 0) and (not np.any(Ws_np))
    if lpf <= 0:
        w_host = _pad_w(Wt_np)
        kernel = _trend_only_kernel
    elif seasonal_dead:
        w_host = _pad_w(Wt_np)
        kernel = _trend_zero_seasonal_kernel
    else:
        # One MXU stream per tile: stack [Ws; Wt] along the output-row axis.
        w_host = np.concatenate([_pad_w(Ws_np), _pad_w(Wt_np)], axis=0)
        kernel = _fused_seasonal_trend_kernel
    w_rows = w_host.shape[0]
    w_dev = jnp.asarray(w_host, compute_dtype)

    itemsize_c = jnp.dtype(compute_dtype).itemsize
    itemsize_o = jnp.dtype(out_dtype).itemsize
    nbuf = max(int(io_buffers), 2)
    # Worst-case footprint (assume weight double-buffered in case Buffered(1)
    # is unavailable) + headroom; this only raises the scoped-VMEM cap.
    vmem_bytes = (2 * w_rows * Lp * itemsize_c
                  + nbuf * Lp * Mt * itemsize_c
                  + 2 * nbuf * Lp * Mt * itemsize_o)
    vmem_limit = min(max(int(vmem_bytes * 1.25) + (2 << 20), 32 << 20), 128 << 20)

    cost = pl.CostEstimate(
        flops=2 * w_rows * Lp * Mp,
        transcendentals=0,
        bytes_accessed=itemsize_c * (w_rows * Lp + Lp * Mp)
                       + itemsize_o * 2 * Lp * Mp,
    )
    cparams = pltpu.CompilerParams(dimension_semantics=("parallel",),
                                   vmem_limit_bytes=vmem_limit)
    out_shape = (jax.ShapeDtypeStruct((Lp, Mp), out_dtype),
                 jax.ShapeDtypeStruct((Lp, Mp), out_dtype))

    def _run(single_buffer_weight):
        if single_buffer_weight:
            # Operator is constant across the grid: one buffer is enough.
            w_spec = pl.BlockSpec((w_rows, Lp), lambda j: (0, 0),
                                  pipeline_mode=pl.Buffered(1))
        else:
            w_spec = pl.BlockSpec((w_rows, Lp), lambda j: (0, 0))
        if nbuf == 2:
            xio_spec = pl.BlockSpec((Lp, Mt), lambda j: (0, j))
        else:
            xio_spec = pl.BlockSpec((Lp, Mt), lambda j: (0, j),
                                    pipeline_mode=pl.Buffered(nbuf))
        return pl.pallas_call(
            kernel,
            out_shape=out_shape,
            grid=(num_tiles,),
            in_specs=[w_spec, xio_spec],
            out_specs=[xio_spec, xio_spec],
            compiler_params=cparams,
            cost_estimate=cost,
        )(w_dev, x2)

    try:
        xs2, xt2 = _run(True)
    except Exception:
        # Older jax without BlockSpec pipeline_mode support: default buffering.
        xs2, xt2 = _run(False)

    def _unpack(y2):
        return jnp.transpose(y2[:L, :M].reshape(L, B, C), (1, 0, 2))

    return _unpack(xs2), _unpack(xt2)


# ------------------------------- reference ---------------------------------- #

def _reference(x, st_sep, padding_rate=9, lpf=0):
    """Pure-JAX FFT reference mirroring the PyTorch forward exactly."""
    B, L, C = x.shape
    pad = jnp.zeros((B, L * padding_rate, C), x.dtype)
    xp = jnp.concatenate([x, pad], axis=1)
    x_fft = jnp.fft.rfft(xp, axis=1)
    sep = int(st_sep * (padding_rate + 1))
    x_s = x_fft.at[:, :sep, :].set(0)
    x_t = x_fft - x_s
    if lpf > 0:
        x_s = x_s.at[:, int(lpf * (padding_rate + 1)):, :].set(0)
    x_s = jnp.fft.irfft(x_s, axis=1)[:, :L, :]
    x_t = jnp.fft.irfft(x_t, axis=1)[:, :L, :]
    return x_s.astype(jnp.float32), x_t.astype(jnp.float32)


if __name__ == "__main__":
    B, L, C = 2, 16, 8
    padding_rate = 9

    key = jax.random.PRNGKey(0)
    x = jax.random.normal(key, (B, L, C), dtype=jnp.float32)

    # Exercise all three kernel paths: lpf == 0 (trend matmul + VPU subtract),
    # lpf > st_sep (fused [Ws; Wt] matmul), lpf <= st_sep (dead seasonal band).
    for st_sep, lpf in ((3, 0), (3, 5), (5, 3)):
        xs_ref, xt_ref = _reference(x, st_sep, padding_rate=padding_rate, lpf=lpf)

        # f32 compute path: tight tolerance against the FFT reference.
        xs, xt = fft_decomp_forward(x, st_sep, padding_rate=padding_rate, lpf=lpf,
                                    compute_dtype=jnp.float32)
        jax.block_until_ready((xs, xt))
        assert np.allclose(np.asarray(xs), np.asarray(xs_ref), atol=2e-3, rtol=1e-3)
        assert np.allclose(np.asarray(xt), np.asarray(xt_ref), atol=2e-3, rtol=1e-3)

        # bf16 compute path (default, MXU-native): looser tolerance.
        xs, xt = fft_decomp_forward(x, st_sep, padding_rate=padding_rate, lpf=lpf)
        jax.block_until_ready((xs, xt))
        assert np.allclose(np.asarray(xs), np.asarray(xs_ref), atol=5e-2, rtol=5e-2)
        assert np.allclose(np.asarray(xt), np.asarray(xt_ref), atol=5e-2, rtol=5e-2)

    print("KERNEL_OK")
</pallas_src>

<mosaic_0001>
module attributes {stable_mosaic.version = 11 : i64} {
  func.func @_trend_only_kernel(%arg0: i32, %arg1: memref<128x128xf32, #tpu.memory_space<vmem>>, %arg2: memref<128x128xf32, #tpu.memory_space<vmem>>, %arg3: memref<128x128xf32, #tpu.memory_space<vmem>>, %arg4: memref<128x128xf32, #tpu.memory_space<vmem>>) attributes {dimension_semantics = [#tpu.dimension_semantics<parallel>], iteration_bounds = array<i64: 1>, scalar_prefetch = 0 : i64, scratch_operands = 0 : i64, tpu.core_type = #tpu.core_type<tc>, window_params = [{pipeline_mode = #tpu.pipeline_mode<synchronous>, transform_indices = @transform_0, window_bounds = array<i64: 128, 128>}, {transform_indices = @transform_1, window_bounds = array<i64: 128, 128>}, {transform_indices = @transform_2, window_bounds = array<i64: 128, 128>}, {transform_indices = @transform_3, window_bounds = array<i64: 128, 128>}]} {
    %c0 = arith.constant 0 : index
    %c0_0 = arith.constant 0 : index
    %0 = vector.load %arg2[%c0, %c0_0] : memref<128x128xf32, #tpu.memory_space<vmem>>, vector<128x128xf32>
    %c0_1 = arith.constant 0 : index
    %c0_2 = arith.constant 0 : index
    %1 = vector.load %arg1[%c0_1, %c0_2] : memref<128x128xf32, #tpu.memory_space<vmem>>, vector<128x128xf32>
    %cst = arith.constant dense<0.000000e+00> : vector<128x128xf32>
    %2 = tpu.matmul %1, %0, %cst {dimension_numbers = #tpu.dot_dimension_numbers<[1], [0], [0], [1], [0, 0, 1, 1], [], []>} : vector<128x128xf32>, vector<128x128xf32>, vector<128x128xf32> -> vector<128x128xf32>
    %c0_3 = arith.constant 0 : index
    %c0_4 = arith.constant 0 : index
    %3 = vector.load %arg4[%c0_3, %c0_4] : memref<128x128xf32, #tpu.memory_space<vmem>>, vector<128x128xf32>
    tpu.vector_store %arg4[%c0_3, %c0_4], %2 {strides = array<i32>} : memref<128x128xf32, #tpu.memory_space<vmem>>, vector<128x128xf32>,
    %4 = arith.subf %0, %2 : vector<128x128xf32>
    %c0_5 = arith.constant 0 : index
    %c0_6 = arith.constant 0 : index
    %5 = vector.load %arg3[%c0_5, %c0_6] : memref<128x128xf32, #tpu.memory_space<vmem>>, vector<128x128xf32>
    tpu.vector_store %arg3[%c0_5, %c0_6], %4 {strides = array<i32>} : memref<128x128xf32, #tpu.memory_space<vmem>>, vector<128x128xf32>,
    return
  }
  func.func @transform_0(%arg0: i32) -> (i32, i32) {
    %c0_i32 = arith.constant 0 : i32
    %c0_i32_0 = arith.constant 0 : i32
    %c0_i32_1 = arith.constant 0 : i32
    return %c0_i32, %c0_i32_0 : i32, i32
  }
  func.func @transform_1(%arg0: i32) -> (i32, i32) {
    %c0_i32 = arith.constant 0 : i32
    %c0_i32_0 = arith.constant 0 : i32
    return %c0_i32, %arg0 : i32, i32
  }
  func.func @transform_2(%arg0: i32) -> (i32, i32) {
    %c0_i32 = arith.constant 0 : i32
    %c0_i32_0 = arith.constant 0 : i32
    return %c0_i32, %arg0 : i32, i32
  }
  func.func @transform_3(%arg0: i32) -> (i32, i32) {
    %c0_i32 = arith.constant 0 : i32
    %c0_i32_0 = arith.constant 0 : i32
    return %c0_i32, %arg0 : i32, i32
  }
}

module attributes {stable_mosaic.version = 11 : i64} {
  func.func @_trend_only_kernel(%arg0: i32, %arg1: memref<128x128xf32, #tpu.memory_space<vmem>>, %arg2: memref<128x128xf32, #tpu.memory_space<vmem>>, %arg3: memref<128x128xf32, #tpu.memory_space<vmem>>, %arg4: memref<128x128xf32, #tpu.memory_space<vmem>>) attributes {dimension_semantics = [#tpu.dimension_semantics<parallel>], iteration_bounds = array<i64: 1>, scalar_prefetch = 0 : i64, scratch_operands = 0 : i64, tpu.core_type = #tpu.core_type<tc>, window_params = [{pipeline_mode = #tpu.pipeline_mode<synchronous>, transform_indices = @transform_0, window_bounds = array<i64: 128, 128>}, {transform_indices = @transform_1, window_bounds = array<i64: 128, 128>}, {transform_indices = @transform_2, window_bounds = array<i64: 128, 128>}, {transform_indices = @transform_3, window_bounds = array<i64: 128, 128>}]} {
    %c0 = arith.constant 0 : index
    %c0_0 = arith.constant 0 : index
    %0 = vector.load %arg2[%c0, %c0_0] : memref<128x128xf32, #tpu.memory_space<vmem>>, vector<128x128xf32>
    %c0_1 = arith.constant 0 : index
    %c0_2 = arith.constant 0 : index
    %1 = vector.load %arg1[%c0_1, %c0_2] : memref<128x128xf32, #tpu.memory_space<vmem>>, vector<128x128xf32>
    %cst = arith.constant dense<0.000000e+00> : vector<128x128xf32>
    %2 = tpu.matmul %1, %0, %cst {dimension_numbers = #tpu.dot_dimension_numbers<[1], [0], [0], [1], [0, 0, 1, 1], [], []>} : vector<128x128xf32>, vector<128x128xf32>, vector<128x128xf32> -> vector<128x128xf32>
    %c0_3 = arith.constant 0 : index
    %c0_4 = arith.constant 0 : index
    %3 = vector.load %arg4[%c0_3, %c0_4] : memref<128x128xf32, #tpu.memory_space<vmem>>, vector<128x128xf32>
    tpu.vector_store %arg4[%c0_3, %c0_4], %2 {strides = array<i32>} : memref<128x128xf32, #tpu.memory_space<vmem>>, vector<128x128xf32>,
    %4 = arith.subf %0, %2 : vector<128x128xf32>
    %c0_5 = arith.constant 0 : index
    %c0_6 = arith.constant 0 : index
    %5 = vector.load %arg3[%c0_5, %c0_6] : memref<128x128xf32, #tpu.memory_space<vmem>>, vector<128x128xf32>
    tpu.vector_store %arg3[%c0_5, %c0_6], %4 {strides = array<i32>} : memref<128x128xf32, #tpu.memory_space<vmem>>, vector<128x128xf32>,
    return
  }
  func.func @transform_0(%arg0: i32) -> (i32, i32) {
    %c0_i32 = arith.constant 0 : i32
    %c0_i32_0 = arith.constant 0 : i32
    %c0_i32_1 = arith.constant 0 : i32
    return %c0_i32, %c0_i32_0 : i32, i32
  }
  func.func @transform_1(%arg0: i32) -> (i32, i32) {
    %c0_i32 = arith.constant 0 : i32
    %c0_i32_0 = arith.constant 0 : i32
    return %c0_i32, %arg0 : i32, i32
  }
  func.func @transform_2(%arg0: i32) -> (i32, i32) {
    %c0_i32 = arith.constant 0 : i32
    %c0_i32_0 = arith.constant 0 : i32
    return %c0_i32, %arg0 : i32, i32
  }
  func.func @transform_3(%arg0: i32) -> (i32, i32) {
    %c0_i32 = arith.constant 0 : i32
    %c0_i32_0 = arith.constant 0 : i32
    return %c0_i32, %arg0 : i32, i32
  }
}

</mosaic_0001>

<llo_original>
// kernel: tpu_custom_call.1
$region0: #{tpu_custom_call.1}
  #allocation0 [shape = 'u32[]', space=smem, size = 0x4, offset = 0x4, fixed_abs, tag = 'smem constant byte address 0x4 - core index']
  #allocation1 [shape = 'u32[144,128]{1,0:T(1,128)}', space=vmem, size = 0x12000, scoped, tag = 'internal scratch']
  %s0 = inlined_call_operand.hbm [shape: f32[128,128], index: 0, kind: input, shape index: {}]
  %s1 = inlined_call_operand.hbm [shape: f32[128,128], index: 1, kind: input, shape index: {}]
  %s2 = inlined_call_operand.hbm [shape: f32[128,128], index: 2, kind: output, shape index: {0}]
  %s3 = inlined_call_operand.hbm [shape: f32[128,128], index: 3, kind: output, shape index: {1}]
  %4 = xla_tuple %s2, %s3
  %s5 = sld [smem:[#allocation0]]
  $region34: #{tpu_custom_call.1} parent=0
    _
  %s7 = ssub.s32 1, %s5
  %s8 = scalar_select 0, %s7, %s5
  $region1: #{tpu_custom_call.1} parent=0
    #allocation2 [shape = 'u8[65536]{0}', space=vmem, size = 0x10000, scoped, tag = 'input window, operand 0, single buffered']
    #allocation3 [shape = 's32[1]{0}', space=sflag, size = 0x4, scoped, tag = 'scoped memory for tpu_custom_call.1']
    #allocation4 [shape = 's32[1]{0}', space=sflag, size = 0x4, scoped, tag = 'scoped memory for tpu_custom_call.1']
    #allocation5 [shape = 'u8[65536]{0}', space=vmem, size = 0x10000, scoped, tag = 'input window, operand 1, single buffered']
    #allocation6 [shape = 's32[1]{0}', space=sflag, size = 0x4, scoped, tag = 'scoped memory for tpu_custom_call.1']
    #allocation7 [shape = 'u8[65536]{0}', space=vmem, size = 0x10000, scoped, tag = 'output window, operand 0, single buffered']
    #allocation8 [shape = 'u8[65536]{0}', space=vmem, size = 0x10000, scoped, tag = 'output window, operand 1, single buffered']
    #allocation9 [shape = 's32[1]{0}', space=sflag, size = 0x4, scoped, tag = 'scoped memory for tpu_custom_call.1']
    %9 = vsyncpa [#allocation3], 0
    %10 = vsyncpa [#allocation6], 0
    %11 = vsyncpa [#allocation4], 0
    %12 = vsyncpa [#allocation9], 0
    // Predicated region
    $region2: #{tpu_custom_call.1} parent=1 // pred_check
      _
    $region3: #{tpu_custom_call.1} parent=1 // pred_check_branch
      %14 = sbr.rel (0) target = $region5
    $region4: #{tpu_custom_call.1} parent=1 // pred_region
      %s16 = ssub.s32 2048, 2048
      %17 = vsyncadd [#allocation3], %s16
      %s18 = sshll.u32 [#allocation2], 4
      %s19 = int_to_ptr.vmem [resolvable:$true] %s18
      %24 = dma.hbm_to_vmem [thread:$0]  %s0, 2048, %s19, [#allocation3], 128, 128, 8
    $region5: #{tpu_custom_call.1} parent=1 // pred_fallthru
      _
    // Predicated region
    $region6: #{tpu_custom_call.1} parent=1 // pred_check
      _
    $region7: #{tpu_custom_call.1} parent=1 // pred_check_branch
      %26 = sbr.rel (0) target = $region9
    $region8: #{tpu_custom_call.1} parent=1 // pred_region
      %s28 = ssub.s32 2048, 2048
      %29 = vsyncadd [#allocation6], %s28
      %s30 = sshll.u32 [#allocation5], 4
      %s31 = int_to_ptr.vmem [resolvable:$true] %s30
      %36 = dma.hbm_to_vmem [thread:$0]  %s1, 2048, %s31, [#allocation6], 128, 128, 8
    $region9: #{tpu_custom_call.1} parent=1 // pred_fallthru
      _
    // Predicated region
    $region10: #{tpu_custom_call.1} parent=1 // pred_check
      _
    $region11: #{tpu_custom_call.1} parent=1 // pred_check_branch
      %38 = sbr.rel (0) target = $region13
    $region12: #{tpu_custom_call.1} parent=1 // pred_region
      %39 = dma.done [#allocation3], 2048
    $region13: #{tpu_custom_call.1} parent=1 // pred_fallthru
      _
    // Predicated region
    $region14: #{tpu_custom_call.1} parent=1 // pred_check
      _
    $region15: #{tpu_custom_call.1} parent=1 // pred_check_branch
      %41 = sbr.rel (0) target = $region17
    $region16: #{tpu_custom_call.1} parent=1 // pred_region
      %42 = dma.done [#allocation6], 2048
    $region17: #{tpu_custom_call.1} parent=1 // pred_fallthru
      _
    %v43 = vld [vmem:[#allocation5] sm:$0xff]
    %v44 = vld [vmem:[#allocation5 + $0x8] sm:$0xff]
    %v45 = vld [vmem:[#allocation5 + $0x10] sm:$0xff]
    %v46 = vld [vmem:[#allocation5 + $0x18] sm:$0xff]
    %v47 = vld [vmem:[#allocation5 + $0x20] sm:$0xff]
    %v48 = vld [vmem:[#allocation5 + $0x28] sm:$0xff]
    %v49 = vld [vmem:[#allocation5 + $0x30] sm:$0xff]
    %v50 = vld [vmem:[#allocation5 + $0x38] sm:$0xff]
    %v51 = vld [vmem:[#allocation5 + $0x40] sm:$0xff]
    %v52 = vld [vmem:[#allocation5 + $0x48] sm:$0xff]
    %v53 = vld [vmem:[#allocation5 + $0x50] sm:$0xff]
    %v54 = vld [vmem:[#allocation5 + $0x58] sm:$0xff]
    %v55 = vld [vmem:[#allocation5 + $0x60] sm:$0xff]
    %v56 = vld [vmem:[#allocation5 + $0x68] sm:$0xff]
    %v57 = vld [vmem:[#allocation5 + $0x70] sm:$0xff]
    %v58 = vld [vmem:[#allocation5 + $0x78] sm:$0xff]
    %v59 = vld [vmem:[#allocation2] sm:$0xff]
    %v60 = vld [vmem:[#allocation2 + $0x8] sm:$0xff]
    %v61 = vld [vmem:[#allocation2 + $0x10] sm:$0xff]
    %v62 = vld [vmem:[#allocation2 + $0x18] sm:$0xff]
    %v63 = vld [vmem:[#allocation2 + $0x20] sm:$0xff]
    %v64 = vld [vmem:[#allocation2 + $0x28] sm:$0xff]
    %v65 = vld [vmem:[#allocation2 + $0x30] sm:$0xff]
    %v66 = vld [vmem:[#allocation2 + $0x38] sm:$0xff]
    %v67 = vld [vmem:[#allocation2 + $0x40] sm:$0xff]
    %v68 = vld [vmem:[#allocation2 + $0x48] sm:$0xff]
    %v69 = vld [vmem:[#allocation2 + $0x50] sm:$0xff]
    %v70 = vld [vmem:[#allocation2 + $0x58] sm:$0xff]
    %v71 = vld [vmem:[#allocation2 + $0x60] sm:$0xff]
    %v72 = vld [vmem:[#allocation2 + $0x68] sm:$0xff]
    %v73 = vld [vmem:[#allocation2 + $0x70] sm:$0xff]
    %v74 = vld [vmem:[#allocation2 + $0x78] sm:$0xff]
    %75 = vmatprep.subr.mxu0 0.0
    %76 = vmatpush1.msra.mxu0 %v43
    %77 = vmatprep.subr.mxu0 0.0
    %78 = vmatpush1.msra.mxu0 %v44
    %79 = vmatprep.subr.mxu0 0.0
    %80 = vmatpush1.msra.mxu0 %v45
    %81 = vmatprep.subr.mxu0 0.0
    %82 = vmatpush1.msra.mxu0 %v46
    %83 = vmatprep.subr.mxu0 0.0
    %84 = vmatpush1.msra.mxu0 %v47
    %85 = vmatprep.subr.mxu0 0.0
    %86 = vmatpush1.msra.mxu0 %v48
    %87 = vmatprep.subr.mxu0 0.0
    %88 = vmatpush1.msra.mxu0 %v49
    %89 = vmatprep.subr.mxu0 0.0
    %90 = vmatpush1.msra.mxu0 %v50
    %91 = vmatprep.subr.mxu0 0.0
    %92 = vmatpush1.msra.mxu0 %v51
    %93 = vmatprep.subr.mxu0 0.0
    %94 = vmatpush1.msra.mxu0 %v52
    %95 = vmatprep.subr.mxu0 0.0
    %96 = vmatpush1.msra.mxu0 %v53
    %97 = vmatprep.subr.mxu0 0.0
    %98 = vmatpush1.msra.mxu0 %v54
    %99 = vmatprep.subr.mxu0 0.0
    %100 = vmatpush1.msra.mxu0 %v55
    %101 = vmatprep.subr.mxu0 0.0
    %102 = vmatpush1.msra.mxu0 %v56
    %103 = vmatprep.subr.mxu0 0.0
    %104 = vmatpush1.msra.mxu0 %v57
    %105 = vmatprep.subr.mxu0 0.0
    %106 = vmatpush1.msra.mxu0 %v58
    %107 = vmatprep.subr.mxu0 0.0
    %108 = vmatpush1.msra.mxu0 0.0
    %109 = vmatprep.subr.mxu0 0.0
    %110 = vmatpush1.msra.mxu0 0.0
    %111 = vmatprep.subr.mxu0 0.0
    %112 = vmatpush1.msra.mxu0 0.0
    %113 = vmatprep.subr.mxu0 0.0
    %114 = vmatpush1.msra.mxu0 0.0
    %115 = vmatprep.subr.mxu0 0.0
    %116 = vmatpush1.msra.mxu0 0.0
    %117 = vmatprep.subr.mxu0 0.0
    %118 = vmatpush1.msra.mxu0 0.0
    %119 = vmatprep.subr.mxu0 0.0
    %120 = vmatpush1.msra.mxu0 0.0
    %121 = vmatprep.subr.mxu0 0.0
    %122 = vmatpush1.msra.mxu0 0.0
    %123 = vmatprep.subr.mxu0 0.0
    %124 = vmatpush1.msra.mxu0 0.0
    %125 = vmatprep.subr.mxu0 0.0
    %126 = vmatpush1.msra.mxu0 0.0
    %127 = vmatprep.subr.mxu0 0.0
    %128 = vmatpush1.msra.mxu0 0.0
    %129 = vmatprep.subr.mxu0 0.0
    %130 = vmatpush1.msra.mxu0 0.0
    %131 = vmatprep.subr.mxu0 0.0
    %132 = vmatpush1.msra.mxu0 0.0
    %133 = vmatprep.subr.mxu0 0.0
    %134 = vmatpush1.msra.mxu0 0.0
    %135 = vmatprep.subr.mxu0 0.0
    %136 = vmatpush1.msra.mxu0 0.0
    %137 = vmatprep.subr.mxu0 0.0
    %138 = vmatpush1.msra.mxu0 0.0
    %139 = vmatprep.mubr.f32.mxu0 0.0
    %140 = vmatmul.mubr.f32.gmra.mrb[0].mxu0 %v59
    %v141 = vpop.f32.mrb[0].mxu0
    %v142 = vadd.f32 0.0, %v141
    %v143 = vpop.f32.mrb[0].mxu0
    %144 = vmatprep.mubr.f32.mxu0 0.0
    %145 = vmatmul.mubr.f32.gmra.mrb[0].mxu0 %v60
    %v146 = vpop.f32.mrb[0].mxu0
    %v147 = vadd.f32 0.0, %v146
    %v148 = vpop.f32.mrb[0].mxu0
    %149 = vmatprep.mubr.f32.mxu0 0.0
    %150 = vmatmul.mubr.f32.gmra.mrb[0].mxu0 %v61
    %v151 = vpop.f32.mrb[0].mxu0
    %v152 = vadd.f32 0.0, %v151
    %v153 = vpop.f32.mrb[0].mxu0
    %154 = vmatprep.mubr.f32.mxu0 0.0
    %155 = vmatmul.mubr.f32.gmra.mrb[0].mxu0 %v62
    %v156 = vpop.f32.mrb[0].mxu0
    %v157 = vadd.f32 0.0, %v156
    %v158 = vpop.f32.mrb[0].mxu0
    %159 = vmatprep.mubr.f32.mxu0 0.0
    %160 = vmatmul.mubr.f32.gmra.mrb[0].mxu0 %v63
    %v161 = vpop.f32.mrb[0].mxu0
    %v162 = vadd.f32 0.0, %v161
    %v163 = vpop.f32.mrb[0].mxu0
    %164 = vmatprep.mubr.f32.mxu0 0.0
    %165 = vmatmul.mubr.f32.gmra.mrb[0].mxu0 %v64
    %v166 = vpop.f32.mrb[0].mxu0
    %v167 = vadd.f32 0.0, %v166
    %v168 = vpop.f32.mrb[0].mxu0
    %169 = vmatprep.mubr.f32.mxu0 0.0
    %170 = vmatmul.mubr.f32.gmra.mrb[0].mxu0 %v65
    %v171 = vpop.f32.mrb[0].mxu0
    %v172 = vadd.f32 0.0, %v171
    %v173 = vpop.f32.mrb[0].mxu0
    %174 = vmatprep.mubr.f32.mxu0 0.0
    %175 = vmatmul.mubr.f32.gmra.mrb[0].mxu0 %v66
    %v176 = vpop.f32.mrb[0].mxu0
    %v177 = vadd.f32 0.0, %v176
    %v178 = vpop.f32.mrb[0].mxu0
    %179 = vmatprep.mubr.f32.mxu0 0.0
    %180 = vmatmul.mubr.f32.gmra.mrb[0].mxu0 %v67
    %v181 = vpop.f32.mrb[0].mxu0
    %v182 = vadd.f32 0.0, %v181
    %v183 = vpop.f32.mrb[0].mxu0
    %184 = vmatprep.mubr.f32.mxu0 0.0
    %185 = vmatmul.mubr.f32.gmra.mrb[0].mxu0 %v68
    %v186 = vpop.f32.mrb[0].mxu0
    %v187 = vadd.f32 0.0, %v186
    %v188 = vpop.f32.mrb[0].mxu0
    %189 = vmatprep.mubr.f32.mxu0 0.0
    %190 = vmatmul.mubr.f32.gmra.mrb[0].mxu0 %v69
    %v191 = vpop.f32.mrb[0].mxu0
    %v192 = vadd.f32 0.0, %v191
    %v193 = vpop.f32.mrb[0].mxu0
    %194 = vmatprep.mubr.f32.mxu0 0.0
    %195 = vmatmul.mubr.f32.gmra.mrb[0].mxu0 %v70
    %v196 = vpop.f32.mrb[0].mxu0
    %v197 = vadd.f32 0.0, %v196
    %v198 = vpop.f32.mrb[0].mxu0
    %199 = vmatprep.mubr.f32.mxu0 0.0
    %200 = vmatmul.mubr.f32.gmra.mrb[0].mxu0 %v71
    %v201 = vpop.f32.mrb[0].mxu0
    %v202 = vadd.f32 0.0, %v201
    %v203 = vpop.f32.mrb[0].mxu0
    %204 = vmatprep.mubr.f32.mxu0 0.0
    %205 = vmatmul.mubr.f32.gmra.mrb[0].mxu0 %v72
    %v206 = vpop.f32.mrb[0].mxu0
    %v207 = vadd.f32 0.0, %v206
    %v208 = vpop.f32.mrb[0].mxu0
    %209 = vmatprep.mubr.f32.mxu0 0.0
    %210 = vmatmul.mubr.f32.gmra.mrb[0].mxu0 %v73
    %v211 = vpop.f32.mrb[0].mxu0
    %v212 = vadd.f32 0.0, %v211
    %v213 = vpop.f32.mrb[0].mxu0
    %214 = vmatprep.mubr.f32.mxu0 0.0
    %215 = vmatmul.mubr.f32.gmra.mrb[0].mxu0 %v74
    %v216 = vpop.f32.mrb[0].mxu0
    %v217 = vadd.f32 0.0, %v216
    %v218 = vpop.f32.mrb[0].mxu0
    %219 = vdwg.mxu0
    %220 = vst [vmem:[#allocation8] sm:$0xff] %v142
    %221 = vst [vmem:[#allocation8 + $0x8] sm:$0xff] %v147
    %222 = vst [vmem:[#allocation8 + $0x10] sm:$0xff] %v152
    %223 = vst [vmem:[#allocation8 + $0x18] sm:$0xff] %v157
    %224 = vst [vmem:[#allocation8 + $0x20] sm:$0xff] %v162
    %225 = vst [vmem:[#allocation8 + $0x28] sm:$0xff] %v167
    %226 = vst [vmem:[#allocation8 + $0x30] sm:$0xff] %v172
    %227 = vst [vmem:[#allocation8 + $0x38] sm:$0xff] %v177
    %228 = vst [vmem:[#allocation8 + $0x40] sm:$0xff] %v182
    %229 = vst [vmem:[#allocation8 + $0x48] sm:$0xff] %v187
    %230 = vst [vmem:[#allocation8 + $0x50] sm:$0xff] %v192
    %231 = vst [vmem:[#allocation8 + $0x58] sm:$0xff] %v197
    %232 = vst [vmem:[#allocation8 + $0x60] sm:$0xff] %v202
    %233 = vst [vmem:[#allocation8 + $0x68] sm:$0xff] %v207
    %234 = vst [vmem:[#allocation8 + $0x70] sm:$0xff] %v212
    %235 = vst [vmem:[#allocation8 + $0x78] sm:$0xff] %v217
    %v236 = vsub.f32 %v43, %v142
    %v237 = vsub.f32 %v44, %v147
    %v238 = vsub.f32 %v45, %v152
    %v239 = vsub.f32 %v46, %v157
    %v240 = vsub.f32 %v47, %v162
    %v241 = vsub.f32 %v48, %v167
    %v242 = vsub.f32 %v49, %v172
    %v243 = vsub.f32 %v50, %v177
    %v244 = vsub.f32 %v51, %v182
    %v245 = vsub.f32 %v52, %v187
    %v246 = vsub.f32 %v53, %v192
    %v247 = vsub.f32 %v54, %v197
    %v248 = vsub.f32 %v55, %v202
    %v249 = vsub.f32 %v56, %v207
    %v250 = vsub.f32 %v57, %v212
    %v251 = vsub.f32 %v58, %v217
    %252 = vst [vmem:[#allocation7] sm:$0xff] %v236
    %253 = vst [vmem:[#allocation7 + $0x8] sm:$0xff] %v237
    %254 = vst [vmem:[#allocation7 + $0x10] sm:$0xff] %v238
    %255 = vst [vmem:[#allocation7 + $0x18] sm:$0xff] %v239
    %256 = vst [vmem:[#allocation7 + $0x20] sm:$0xff] %v240
    %257 = vst [vmem:[#allocation7 + $0x28] sm:$0xff] %v241
    %258 = vst [vmem:[#allocation7 + $0x30] sm:$0xff] %v242
    %259 = vst [vmem:[#allocation7 + $0x38] sm:$0xff] %v243
    %260 = vst [vmem:[#allocation7 + $0x40] sm:$0xff] %v244
    %261 = vst [vmem:[#allocation7 + $0x48] sm:$0xff] %v245
    %262 = vst [vmem:[#allocation7 + $0x50] sm:$0xff] %v246
    %263 = vst [vmem:[#allocation7 + $0x58] sm:$0xff] %v247
    %264 = vst [vmem:[#allocation7 + $0x60] sm:$0xff] %v248
    %265 = vst [vmem:[#allocation7 + $0x68] sm:$0xff] %v249
    %266 = vst [vmem:[#allocation7 + $0x70] sm:$0xff] %v250
    %267 = vst [vmem:[#allocation7 + $0x78] sm:$0xff] %v251
    // Predicated region
    $region18: #{tpu_custom_call.1} parent=1 // pred_check
      _
    $region19: #{tpu_custom_call.1} parent=1 // pred_check_branch
      %269 = sbr.rel (0) target = $region21
    $region20: #{tpu_custom_call.1} parent=1 // pred_region
      %s271 = ssub.s32 2048, 2048
      %272 = vsyncadd [#allocation4], %s271
      %s273 = sshll.u32 [#allocation7], 4
      %s274 = int_to_ptr.vmem [resolvable:$true] %s273
      %279 = dma.vmem_to_hbm [thread:$0]  %s274, 2048, %s2, [#allocation4], 128, 128, 8
    $region21: #{tpu_custom_call.1} parent=1 // pred_fallthru
      _
    // Predicated region
    $region22: #{tpu_custom_call.1} parent=1 // pred_check
      _
    $region23: #{tpu_custom_call.1} parent=1 // pred_check_branch
      %281 = sbr.rel (0) target = $region25
    $region24: #{tpu_custom_call.1} parent=1 // pred_region
      %s283 = ssub.s32 2048, 2048
      %284 = vsyncadd [#allocation9], %s283
      %s285 = sshll.u32 [#allocation8], 4
      %s286 = int_to_ptr.vmem [resolvable:$true] %s285
      %291 = dma.vmem_to_hbm [thread:$0]  %s286, 2048, %s3, [#allocation9], 128, 128, 8
    $region25: #{tpu_custom_call.1} parent=1 // pred_fallthru
      _
    // Predicated region
    $region26: #{tpu_custom_call.1} parent=1 // pred_check
      _
    $region27: #{tpu_custom_call.1} parent=1 // pred_check_branch
      %293 = sbr.rel (0) target = $region29
    $region28: #{tpu_custom_call.1} parent=1 // pred_region
      %294 = dma.done [#allocation4], 2048
    $region29: #{tpu_custom_call.1} parent=1 // pred_fallthru
      _
    // Predicated region
    $region30: #{tpu_custom_call.1} parent=1 // pred_check
      _
    $region31: #{tpu_custom_call.1} parent=1 // pred_check_branch
      %296 = sbr.rel (0) target = $region33
    $region32: #{tpu_custom_call.1} parent=1 // pred_region
      %297 = dma.done [#allocation9], 2048
    $region33: #{tpu_custom_call.1} parent=1 // pred_fallthru
      _
    %298 = vsyncpa [#allocation3], 1
    %299 = vsyncpa [#allocation6], 1
    %300 = vsyncpa [#allocation4], 1
    %301 = vsyncpa [#allocation9], 1

// kernel: tpu_custom_call.1
$region0: #{tpu_custom_call.1}
  #allocation0 [shape = 'u32[]', space=smem, size = 0x4, offset = 0x4, fixed_abs, tag = 'smem constant byte address 0x4 - core index']
  #allocation1 [shape = 'u32[144,128]{1,0:T(1,128)}', space=vmem, size = 0x12000, scoped, tag = 'internal scratch']
  %s0 = inlined_call_operand.hbm [shape: f32[128,128], index: 0, kind: input, shape index: {}]
  %s1 = inlined_call_operand.hbm [shape: f32[128,128], index: 1, kind: input, shape index: {}]
  %s2 = inlined_call_operand.hbm [shape: f32[128,128], index: 2, kind: output, shape index: {0}]
  %s3 = inlined_call_operand.hbm [shape: f32[128,128], index: 3, kind: output, shape index: {1}]
  %4 = xla_tuple %s2, %s3
  %s5 = sld [smem:[#allocation0]]
  $region34: #{tpu_custom_call.1} parent=0
    _
  %s7 = ssub.s32 1, %s5
  %s8 = scalar_select 0, %s7, %s5
  $region1: #{tpu_custom_call.1} parent=0
    #allocation2 [shape = 'u8[65536]{0}', space=vmem, size = 0x10000, scoped, tag = 'input window, operand 0, single buffered']
    #allocation3 [shape = 's32[1]{0}', space=sflag, size = 0x4, scoped, tag = 'scoped memory for tpu_custom_call.1']
    #allocation4 [shape = 's32[1]{0}', space=sflag, size = 0x4, scoped, tag = 'scoped memory for tpu_custom_call.1']
    #allocation5 [shape = 'u8[65536]{0}', space=vmem, size = 0x10000, scoped, tag = 'input window, operand 1, single buffered']
    #allocation6 [shape = 's32[1]{0}', space=sflag, size = 0x4, scoped, tag = 'scoped memory for tpu_custom_call.1']
    #allocation7 [shape = 'u8[65536]{0}', space=vmem, size = 0x10000, scoped, tag = 'output window, operand 0, single buffered']
    #allocation8 [shape = 'u8[65536]{0}', space=vmem, size = 0x10000, scoped, tag = 'output window, operand 1, single buffered']
    #allocation9 [shape = 's32[1]{0}', space=sflag, size = 0x4, scoped, tag = 'scoped memory for tpu_custom_call.1']
    %9 = vsyncpa [#allocation3], 0
    %10 = vsyncpa [#allocation6], 0
    %11 = vsyncpa [#allocation4], 0
    %12 = vsyncpa [#allocation9], 0
    // Predicated region
    $region2: #{tpu_custom_call.1} parent=1 // pred_check
      _
    $region3: #{tpu_custom_call.1} parent=1 // pred_check_branch
      %14 = sbr.rel (0) target = $region5
    $region4: #{tpu_custom_call.1} parent=1 // pred_region
      %s16 = ssub.s32 2048, 2048
      %17 = vsyncadd [#allocation3], %s16
      %s18 = sshll.u32 [#allocation2], 4
      %s19 = int_to_ptr.vmem [resolvable:$true] %s18
      %24 = dma.hbm_to_vmem [thread:$0]  %s0, 2048, %s19, [#allocation3], 128, 128, 8
    $region5: #{tpu_custom_call.1} parent=1 // pred_fallthru
      _
    // Predicated region
    $region6: #{tpu_custom_call.1} parent=1 // pred_check
      _
    $region7: #{tpu_custom_call.1} parent=1 // pred_check_branch
      %26 = sbr.rel (0) target = $region9
    $region8: #{tpu_custom_call.1} parent=1 // pred_region
      %s28 = ssub.s32 2048, 2048
      %29 = vsyncadd [#allocation6], %s28
      %s30 = sshll.u32 [#allocation5], 4
      %s31 = int_to_ptr.vmem [resolvable:$true] %s30
      %36 = dma.hbm_to_vmem [thread:$0]  %s1, 2048, %s31, [#allocation6], 128, 128, 8
    $region9: #{tpu_custom_call.1} parent=1 // pred_fallthru
      _
    // Predicated region
    $region10: #{tpu_custom_call.1} parent=1 // pred_check
      _
    $region11: #{tpu_custom_call.1} parent=1 // pred_check_branch
      %38 = sbr.rel (0) target = $region13
    $region12: #{tpu_custom_call.1} parent=1 // pred_region
      %39 = dma.done [#allocation3], 2048
    $region13: #{tpu_custom_call.1} parent=1 // pred_fallthru
      _
    // Predicated region
    $region14: #{tpu_custom_call.1} parent=1 // pred_check
      _
    $region15: #{tpu_custom_call.1} parent=1 // pred_check_branch
      %41 = sbr.rel (0) target = $region17
    $region16: #{tpu_custom_call.1} parent=1 // pred_region
      %42 = dma.done [#allocation6], 2048
    $region17: #{tpu_custom_call.1} parent=1 // pred_fallthru
      _
    %v43 = vld [vmem:[#allocation5] sm:$0xff]
    %v44 = vld [vmem:[#allocation5 + $0x8] sm:$0xff]
    %v45 = vld [vmem:[#allocation5 + $0x10] sm:$0xff]
    %v46 = vld [vmem:[#allocation5 + $0x18] sm:$0xff]
    %v47 = vld [vmem:[#allocation5 + $0x20] sm:$0xff]
    %v48 = vld [vmem:[#allocation5 + $0x28] sm:$0xff]
    %v49 = vld [vmem:[#allocation5 + $0x30] sm:$0xff]
    %v50 = vld [vmem:[#allocation5 + $0x38] sm:$0xff]
    %v51 = vld [vmem:[#allocation5 + $0x40] sm:$0xff]
    %v52 = vld [vmem:[#allocation5 + $0x48] sm:$0xff]
    %v53 = vld [vmem:[#allocation5 + $0x50] sm:$0xff]
    %v54 = vld [vmem:[#allocation5 + $0x58] sm:$0xff]
    %v55 = vld [vmem:[#allocation5 + $0x60] sm:$0xff]
    %v56 = vld [vmem:[#allocation5 + $0x68] sm:$0xff]
    %v57 = vld [vmem:[#allocation5 + $0x70] sm:$0xff]
    %v58 = vld [vmem:[#allocation5 + $0x78] sm:$0xff]
    %v59 = vld [vmem:[#allocation2] sm:$0xff]
    %v60 = vld [vmem:[#allocation2 + $0x8] sm:$0xff]
    %v61 = vld [vmem:[#allocation2 + $0x10] sm:$0xff]
    %v62 = vld [vmem:[#allocation2 + $0x18] sm:$0xff]
    %v63 = vld [vmem:[#allocation2 + $0x20] sm:$0xff]
    %v64 = vld [vmem:[#allocation2 + $0x28] sm:$0xff]
    %v65 = vld [vmem:[#allocation2 + $0x30] sm:$0xff]
    %v66 = vld [vmem:[#allocation2 + $0x38] sm:$0xff]
    %v67 = vld [vmem:[#allocation2 + $0x40] sm:$0xff]
    %v68 = vld [vmem:[#allocation2 + $0x48] sm:$0xff]
    %v69 = vld [vmem:[#allocation2 + $0x50] sm:$0xff]
    %v70 = vld [vmem:[#allocation2 + $0x58] sm:$0xff]
    %v71 = vld [vmem:[#allocation2 + $0x60] sm:$0xff]
    %v72 = vld [vmem:[#allocation2 + $0x68] sm:$0xff]
    %v73 = vld [vmem:[#allocation2 + $0x70] sm:$0xff]
    %v74 = vld [vmem:[#allocation2 + $0x78] sm:$0xff]
    %75 = vmatprep.subr.mxu0 0.0
    %76 = vmatpush1.msra.mxu0 %v43
    %77 = vmatprep.subr.mxu0 0.0
    %78 = vmatpush1.msra.mxu0 %v44
    %79 = vmatprep.subr.mxu0 0.0
    %80 = vmatpush1.msra.mxu0 %v45
    %81 = vmatprep.subr.mxu0 0.0
    %82 = vmatpush1.msra.mxu0 %v46
    %83 = vmatprep.subr.mxu0 0.0
    %84 = vmatpush1.msra.mxu0 %v47
    %85 = vmatprep.subr.mxu0 0.0
    %86 = vmatpush1.msra.mxu0 %v48
    %87 = vmatprep.subr.mxu0 0.0
    %88 = vmatpush1.msra.mxu0 %v49
    %89 = vmatprep.subr.mxu0 0.0
    %90 = vmatpush1.msra.mxu0 %v50
    %91 = vmatprep.subr.mxu0 0.0
    %92 = vmatpush1.msra.mxu0 %v51
    %93 = vmatprep.subr.mxu0 0.0
    %94 = vmatpush1.msra.mxu0 %v52
    %95 = vmatprep.subr.mxu0 0.0
    %96 = vmatpush1.msra.mxu0 %v53
    %97 = vmatprep.subr.mxu0 0.0
    %98 = vmatpush1.msra.mxu0 %v54
    %99 = vmatprep.subr.mxu0 0.0
    %100 = vmatpush1.msra.mxu0 %v55
    %101 = vmatprep.subr.mxu0 0.0
    %102 = vmatpush1.msra.mxu0 %v56
    %103 = vmatprep.subr.mxu0 0.0
    %104 = vmatpush1.msra.mxu0 %v57
    %105 = vmatprep.subr.mxu0 0.0
    %106 = vmatpush1.msra.mxu0 %v58
    %107 = vmatprep.subr.mxu0 0.0
    %108 = vmatpush1.msra.mxu0 0.0
    %109 = vmatprep.subr.mxu0 0.0
    %110 = vmatpush1.msra.mxu0 0.0
    %111 = vmatprep.subr.mxu0 0.0
    %112 = vmatpush1.msra.mxu0 0.0
    %113 = vmatprep.subr.mxu0 0.0
    %114 = vmatpush1.msra.mxu0 0.0
    %115 = vmatprep.subr.mxu0 0.0
    %116 = vmatpush1.msra.mxu0 0.0
    %117 = vmatprep.subr.mxu0 0.0
    %118 = vmatpush1.msra.mxu0 0.0
    %119 = vmatprep.subr.mxu0 0.0
    %120 = vmatpush1.msra.mxu0 0.0
    %121 = vmatprep.subr.mxu0 0.0
    %122 = vmatpush1.msra.mxu0 0.0
    %123 = vmatprep.subr.mxu0 0.0
    %124 = vmatpush1.msra.mxu0 0.0
    %125 = vmatprep.subr.mxu0 0.0
    %126 = vmatpush1.msra.mxu0 0.0
    %127 = vmatprep.subr.mxu0 0.0
    %128 = vmatpush1.msra.mxu0 0.0
    %129 = vmatprep.subr.mxu0 0.0
    %130 = vmatpush1.msra.mxu0 0.0
    %131 = vmatprep.subr.mxu0 0.0
    %132 = vmatpush1.msra.mxu0 0.0
    %133 = vmatprep.subr.mxu0 0.0
    %134 = vmatpush1.msra.mxu0 0.0
    %135 = vmatprep.subr.mxu0 0.0
    %136 = vmatpush1.msra.mxu0 0.0
    %137 = vmatprep.subr.mxu0 0.0
    %138 = vmatpush1.msra.mxu0 0.0
    %139 = vmatprep.mubr.f32.mxu0 0.0
    %140 = vmatmul.mubr.f32.gmra.mrb[0].mxu0 %v59
    %v141 = vpop.f32.mrb[0].mxu0
    %v142 = vadd.f32 0.0, %v141
    %v143 = vpop.f32.mrb[0].mxu0
    %144 = vmatprep.mubr.f32.mxu0 0.0
    %145 = vmatmul.mubr.f32.gmra.mrb[0].mxu0 %v60
    %v146 = vpop.f32.mrb[0].mxu0
    %v147 = vadd.f32 0.0, %v146
    %v148 = vpop.f32.mrb[0].mxu0
    %149 = vmatprep.mubr.f32.mxu0 0.0
    %150 = vmatmul.mubr.f32.gmra.mrb[0].mxu0 %v61
    %v151 = vpop.f32.mrb[0].mxu0
    %v152 = vadd.f32 0.0, %v151
    %v153 = vpop.f32.mrb[0].mxu0
    %154 = vmatprep.mubr.f32.mxu0 0.0
    %155 = vmatmul.mubr.f32.gmra.mrb[0].mxu0 %v62
    %v156 = vpop.f32.mrb[0].mxu0
    %v157 = vadd.f32 0.0, %v156
    %v158 = vpop.f32.mrb[0].mxu0
    %159 = vmatprep.mubr.f32.mxu0 0.0
    %160 = vmatmul.mubr.f32.gmra.mrb[0].mxu0 %v63
    %v161 = vpop.f32.mrb[0].mxu0
    %v162 = vadd.f32 0.0, %v161
    %v163 = vpop.f32.mrb[0].mxu0
    %164 = vmatprep.mubr.f32.mxu0 0.0
    %165 = vmatmul.mubr.f32.gmra.mrb[0].mxu0 %v64
    %v166 = vpop.f32.mrb[0].mxu0
    %v167 = vadd.f32 0.0, %v166
    %v168 = vpop.f32.mrb[0].mxu0
    %169 = vmatprep.mubr.f32.mxu0 0.0
    %170 = vmatmul.mubr.f32.gmra.mrb[0].mxu0 %v65
    %v171 = vpop.f32.mrb[0].mxu0
    %v172 = vadd.f32 0.0, %v171
    %v173 = vpop.f32.mrb[0].mxu0
    %174 = vmatprep.mubr.f32.mxu0 0.0
    %175 = vmatmul.mubr.f32.gmra.mrb[0].mxu0 %v66
    %v176 = vpop.f32.mrb[0].mxu0
    %v177 = vadd.f32 0.0, %v176
    %v178 = vpop.f32.mrb[0].mxu0
    %179 = vmatprep.mubr.f32.mxu0 0.0
    %180 = vmatmul.mubr.f32.gmra.mrb[0].mxu0 %v67
    %v181 = vpop.f32.mrb[0].mxu0
    %v182 = vadd.f32 0.0, %v181
    %v183 = vpop.f32.mrb[0].mxu0
    %184 = vmatprep.mubr.f32.mxu0 0.0
    %185 = vmatmul.mubr.f32.gmra.mrb[0].mxu0 %v68
    %v186 = vpop.f32.mrb[0].mxu0
    %v187 = vadd.f32 0.0, %v186
    %v188 = vpop.f32.mrb[0].mxu0
    %189 = vmatprep.mubr.f32.mxu0 0.0
    %190 = vmatmul.mubr.f32.gmra.mrb[0].mxu0 %v69
    %v191 = vpop.f32.mrb[0].mxu0
    %v192 = vadd.f32 0.0, %v191
    %v193 = vpop.f32.mrb[0].mxu0
    %194 = vmatprep.mubr.f32.mxu0 0.0
    %195 = vmatmul.mubr.f32.gmra.mrb[0].mxu0 %v70
    %v196 = vpop.f32.mrb[0].mxu0
    %v197 = vadd.f32 0.0, %v196
    %v198 = vpop.f32.mrb[0].mxu0
    %199 = vmatprep.mubr.f32.mxu0 0.0
    %200 = vmatmul.mubr.f32.gmra.mrb[0].mxu0 %v71
    %v201 = vpop.f32.mrb[0].mxu0
    %v202 = vadd.f32 0.0, %v201
    %v203 = vpop.f32.mrb[0].mxu0
    %204 = vmatprep.mubr.f32.mxu0 0.0
    %205 = vmatmul.mubr.f32.gmra.mrb[0].mxu0 %v72
    %v206 = vpop.f32.mrb[0].mxu0
    %v207 = vadd.f32 0.0, %v206
    %v208 = vpop.f32.mrb[0].mxu0
    %209 = vmatprep.mubr.f32.mxu0 0.0
    %210 = vmatmul.mubr.f32.gmra.mrb[0].mxu0 %v73
    %v211 = vpop.f32.mrb[0].mxu0
    %v212 = vadd.f32 0.0, %v211
    %v213 = vpop.f32.mrb[0].mxu0
    %214 = vmatprep.mubr.f32.mxu0 0.0
    %215 = vmatmul.mubr.f32.gmra.mrb[0].mxu0 %v74
    %v216 = vpop.f32.mrb[0].mxu0
    %v217 = vadd.f32 0.0, %v216
    %v218 = vpop.f32.mrb[0].mxu0
    %219 = vdwg.mxu0
    %220 = vst [vmem:[#allocation8] sm:$0xff] %v142
    %221 = vst [vmem:[#allocation8 + $0x8] sm:$0xff] %v147
    %222 = vst [vmem:[#allocation8 + $0x10] sm:$0xff] %v152
    %223 = vst [vmem:[#allocation8 + $0x18] sm:$0xff] %v157
    %224 = vst [vmem:[#allocation8 + $0x20] sm:$0xff] %v162
    %225 = vst [vmem:[#allocation8 + $0x28] sm:$0xff] %v167
    %226 = vst [vmem:[#allocation8 + $0x30] sm:$0xff] %v172
    %227 = vst [vmem:[#allocation8 + $0x38] sm:$0xff] %v177
    %228 = vst [vmem:[#allocation8 + $0x40] sm:$0xff] %v182
    %229 = vst [vmem:[#allocation8 + $0x48] sm:$0xff] %v187
    %230 = vst [vmem:[#allocation8 + $0x50] sm:$0xff] %v192
    %231 = vst [vmem:[#allocation8 + $0x58] sm:$0xff] %v197
    %232 = vst [vmem:[#allocation8 + $0x60] sm:$0xff] %v202
    %233 = vst [vmem:[#allocation8 + $0x68] sm:$0xff] %v207
    %234 = vst [vmem:[#allocation8 + $0x70] sm:$0xff] %v212
    %235 = vst [vmem:[#allocation8 + $0x78] sm:$0xff] %v217
    %v236 = vsub.f32 %v43, %v142
    %v237 = vsub.f32 %v44, %v147
    %v238 = vsub.f32 %v45, %v152
    %v239 = vsub.f32 %v46, %v157
    %v240 = vsub.f32 %v47, %v162
    %v241 = vsub.f32 %v48, %v167
    %v242 = vsub.f32 %v49, %v172
    %v243 = vsub.f32 %v50, %v177
    %v244 = vsub.f32 %v51, %v182
    %v245 = vsub.f32 %v52, %v187
    %v246 = vsub.f32 %v53, %v192
    %v247 = vsub.f32 %v54, %v197
    %v248 = vsub.f32 %v55, %v202
    %v249 = vsub.f32 %v56, %v207
    %v250 = vsub.f32 %v57, %v212
    %v251 = vsub.f32 %v58, %v217
    %252 = vst [vmem:[#allocation7] sm:$0xff] %v236
    %253 = vst [vmem:[#allocation7 + $0x8] sm:$0xff] %v237
    %254 = vst [vmem:[#allocation7 + $0x10] sm:$0xff] %v238
    %255 = vst [vmem:[#allocation7 + $0x18] sm:$0xff] %v239
    %256 = vst [vmem:[#allocation7 + $0x20] sm:$0xff] %v240
    %257 = vst [vmem:[#allocation7 + $0x28] sm:$0xff] %v241
    %258 = vst [vmem:[#allocation7 + $0x30] sm:$0xff] %v242
    %259 = vst [vmem:[#allocation7 + $0x38] sm:$0xff] %v243
    %260 = vst [vmem:[#allocation7 + $0x40] sm:$0xff] %v244
    %261 = vst [vmem:[#allocation7 + $0x48] sm:$0xff] %v245
    %262 = vst [vmem:[#allocation7 + $0x50] sm:$0xff] %v246
    %263 = vst [vmem:[#allocation7 + $0x58] sm:$0xff] %v247
    %264 = vst [vmem:[#allocation7 + $0x60] sm:$0xff] %v248
    %265 = vst [vmem:[#allocation7 + $0x68] sm:$0xff] %v249
    %266 = vst [vmem:[#allocation7 + $0x70] sm:$0xff] %v250
    %267 = vst [vmem:[#allocation7 + $0x78] sm:$0xff] %v251
    // Predicated region
    $region18: #{tpu_custom_call.1} parent=1 // pred_check
      _
    $region19: #{tpu_custom_call.1} parent=1 // pred_check_branch
      %269 = sbr.rel (0) target = $region21
    $region20: #{tpu_custom_call.1} parent=1 // pred_region
      %s271 = ssub.s32 2048, 2048
      %272 = vsyncadd [#allocation4], %s271
      %s273 = sshll.u32 [#allocation7], 4
      %s274 = int_to_ptr.vmem [resolvable:$true] %s273
      %279 = dma.vmem_to_hbm [thread:$0]  %s274, 2048, %s2, [#allocation4], 128, 128, 8
    $region21: #{tpu_custom_call.1} parent=1 // pred_fallthru
      _
    // Predicated region
    $region22: #{tpu_custom_call.1} parent=1 // pred_check
      _
    $region23: #{tpu_custom_call.1} parent=1 // pred_check_branch
      %281 = sbr.rel (0) target = $region25
    $region24: #{tpu_custom_call.1} parent=1 // pred_region
      %s283 = ssub.s32 2048, 2048
      %284 = vsyncadd [#allocation9], %s283
      %s285 = sshll.u32 [#allocation8], 4
      %s286 = int_to_ptr.vmem [resolvable:$true] %s285
      %291 = dma.vmem_to_hbm [thread:$0]  %s286, 2048, %s3, [#allocation9], 128, 128, 8
    $region25: #{tpu_custom_call.1} parent=1 // pred_fallthru
      _
    // Predicated region
    $region26: #{tpu_custom_call.1} parent=1 // pred_check
      _
    $region27: #{tpu_custom_call.1} parent=1 // pred_check_branch
      %293 = sbr.rel (0) target = $region29
    $region28: #{tpu_custom_call.1} parent=1 // pred_region
      %294 = dma.done [#allocation4], 2048
    $region29: #{tpu_custom_call.1} parent=1 // pred_fallthru
      _
    // Predicated region
    $region30: #{tpu_custom_call.1} parent=1 // pred_check
      _
    $region31: #{tpu_custom_call.1} parent=1 // pred_check_branch
      %296 = sbr.rel (0) target = $region33
    $region32: #{tpu_custom_call.1} parent=1 // pred_region
      %297 = dma.done [#allocation9], 2048
    $region33: #{tpu_custom_call.1} parent=1 // pred_fallthru
      _
    %298 = vsyncpa [#allocation3], 1
    %299 = vsyncpa [#allocation6], 1
    %300 = vsyncpa [#allocation4], 1
    %301 = vsyncpa [#allocation9], 1

</llo_original>
